<compile_context>
chip_gen: v7x
topology: tpu7x:2x2x1
jax: 0.10.0
libtpu: 0.0.40
codegen_flags: <defaults>
</compile_context>

<pallas_src>
import jax
import jax.numpy as jnp
from jax.experimental import pallas as pl
from jax.experimental.pallas import tpu as pltpu

_LANE = 128


def _locked_dropout_kernel(x_ref, m_ref, o_ref):
    # x_ref: (tile_t, tile_bh); m_ref: (1, tile_bh) -> broadcast over the tile rows.
    o_ref[...] = x_ref[...] * m_ref[...]


def _make_locked_mask(key, batch, hidden, keep_prob, dtype):
    """(1, B*H) inverted-dropout mask with values in {0, 1/keep_prob}."""
    keep = jax.random.bernoulli(key, p=keep_prob, shape=(1, batch * hidden))
    return jnp.where(keep,
                     jnp.asarray(1.0 / keep_prob, dtype),
                     jnp.asarray(0.0, dtype))


def _sublane(dtype):
    # Packed sublane count: 8 for 4-byte, 16 for 2-byte, 32 for 1-byte dtypes.
    return 8 * max(1, 4 // jnp.dtype(dtype).itemsize)


def _round_down(v, m):
    return max(m, (v // m) * m)


def _choose_tiles(T, BHp, itemsize, sublane, target_block_bytes,
                  wide_row_bytes=2 << 20, wide_tile_bh=8192):
    """Pick (tile_t, tile_bh) targeting ~target_block_bytes per block."""
    row_bytes = BHp * itemsize
    # Only tile the lane axis when a single row is very wide; keeps the common case 1-D
    # and bounds the sublane-padded mask buffer.
    tile_bh = min(BHp, wide_tile_bh) if row_bytes > wide_row_bytes else BHp
    tile_t = max(sublane, target_block_bytes // (tile_bh * itemsize))
    tile_t = _round_down(min(tile_t, T), sublane) if T > sublane else T
    # Ensure >= 2 grid blocks when possible so both v7x TensorCores get work.
    if tile_t >= T and tile_bh >= BHp and T >= 2 * sublane:
        tile_t = _round_down(pl.cdiv(T, 2), sublane)
    return int(tile_t), int(tile_bh)


def locked_dropout(x, key, dropout_rate=0.5, *, training=True, donate_x=True,
                   target_block_bytes=8 << 20, min_pallas_bytes=256 << 10):
    """Pallas LockedDropout forward.  x: (T, B, H)."""
    if (not training) or (not dropout_rate):
        return x
    if not (0.0 < float(dropout_rate) < 1.0):
        raise ValueError(f"dropout_rate must be in [0, 1), got {dropout_rate}")

    T, B, H = x.shape
    keep_prob = 1.0 - float(dropout_rate)
    BH = B * H
    itemsize = jnp.dtype(x.dtype).itemsize

    mask = _make_locked_mask(key, B, H, keep_prob, x.dtype)          # (1, BH)

    # Tiny-input fast path: launch + per-step overhead dominates; let XLA fuse it.
    if T * BH * itemsize < min_pallas_bytes:
        return x * mask.reshape(1, B, H)

    # Lane-dense layout: flatten to (T, BH) and pad BH to a multiple of 128.
    BHp = ((BH + _LANE - 1) // _LANE) * _LANE
    x2d = x.reshape(T, BH)
    if BHp != BH:
        x2d = jnp.pad(x2d, ((0, 0), (0, BHp - BH)))
        mask = jnp.pad(mask, ((0, 0), (0, BHp - BH)))

    sublane = _sublane(x.dtype)
    tile_t, tile_bh = _choose_tiles(T, BHp, itemsize, sublane, target_block_bytes)
    grid = (pl.cdiv(T, tile_t), pl.cdiv(BHp, tile_bh))

    # VMEM: 2 in + 2 out x-blocks, plus the (1, tile_bh) mask block which is
    # sublane-padded (x2 buffers), plus compiler headroom.  Cap at 48 MiB (v7x safe).
    block_bytes = tile_t * tile_bh * itemsize
    mask_block_bytes = sublane * tile_bh * itemsize
    vmem_limit = int(min(4 * block_bytes + 2 * mask_block_bytes + (4 << 20),
                         48 << 20))

    out2d = pl.pallas_call(
        _locked_dropout_kernel,
        out_shape=jax.ShapeDtypeStruct((T, BHp), x.dtype),
        grid=grid,
        in_specs=[
            pl.BlockSpec((tile_t, tile_bh), lambda i, j: (i, j)),   # x tile
            pl.BlockSpec((1, tile_bh), lambda i, j: (0, j)),        # shared mask
        ],
        out_specs=pl.BlockSpec((tile_t, tile_bh), lambda i, j: (i, j)),
        compiler_params=pltpu.CompilerParams(
            dimension_semantics=("parallel", "parallel"),
            vmem_limit_bytes=vmem_limit,
        ),
        input_output_aliases=({0: 0} if donate_x else {}),
    )(x2d, mask)

    if BHp != BH:
        out2d = out2d[:, :BH]
    return out2d.reshape(T, B, H)


if __name__ == "__main__":
    # --- primary test: small shapes consistent with the module (seq, batch, hidden) ---
    T, B, H = 16, 4, 64
    dropout_rate = 0.5
    keep_prob = 1.0 - dropout_rate

    root = jax.random.PRNGKey(0)
    data_key, mask_key, data_key2 = jax.random.split(root, 3)
    x = jax.random.normal(data_key, (T, B, H), dtype=jnp.float32)

    # min_pallas_bytes=0 forces the Pallas path even at this tiny test size.
    out = locked_dropout(x, mask_key, dropout_rate, training=True, min_pallas_bytes=0)
    out = jax.block_until_ready(out)

    ref_mask = _make_locked_mask(mask_key, B, H, keep_prob, x.dtype).reshape(1, B, H)
    expected = x * ref_mask
    assert bool(jnp.allclose(out, expected, atol=1e-6)), "kernel != reference"
    # Locked semantics: mask values are {0, 1/keep_prob} and shared across T.
    assert bool(jnp.all(jnp.logical_or(ref_mask == 0,
                                       jnp.abs(ref_mask - 1.0 / keep_prob) < 1e-6)))

    # --- padding path: B*H not a multiple of 128, bf16 dtype ---
    Tb, Bb, Hb = 12, 3, 50
    xb = jax.random.normal(data_key2, (Tb, Bb, Hb), dtype=jnp.bfloat16)
    outb = locked_dropout(xb, mask_key, 0.25, training=True, min_pallas_bytes=0)
    outb = jax.block_until_ready(outb)
    refb = xb * _make_locked_mask(mask_key, Bb, Hb, 0.75, xb.dtype).reshape(1, Bb, Hb)
    assert bool(jnp.allclose(outb.astype(jnp.float32), refb.astype(jnp.float32),
                             atol=1e-2, rtol=1e-2)), "padded/bf16 kernel != reference"

    # --- eval mode / zero rate are identity ---
    out_eval = locked_dropout(x, mask_key, dropout_rate, training=False)
    assert bool(jnp.all(out_eval == x))
    out_zero = locked_dropout(x, mask_key, 0.0, training=True)
    assert bool(jnp.all(out_zero == x))

    print("KERNEL_OK")
</pallas_src>

<mosaic_0001>
module attributes {stable_mosaic.version = 11 : i64} {
  func.func @_locked_dropout_kernel(%arg0: i32, %arg1: i32, %arg2: memref<8x256xf32, #tpu.memory_space<vmem>>, %arg3: memref<1x256xf32, #tpu.memory_space<vmem>>, %arg4: memref<8x256xf32, #tpu.memory_space<vmem>>) attributes {dimension_semantics = [#tpu.dimension_semantics<parallel>, #tpu.dimension_semantics<parallel>], iteration_bounds = array<i64: 2, 1>, scalar_prefetch = 0 : i64, scratch_operands = 0 : i64, tpu.core_type = #tpu.core_type<tc>, window_params = [{transform_indices = @transform_0, window_bounds = array<i64: 8, 256>}, {transform_indices = @transform_1, window_bounds = array<i64: 1, 256>}, {transform_indices = @transform_2, window_bounds = array<i64: 8, 256>}]} {
    %c0 = arith.constant 0 : index
    %c0_0 = arith.constant 0 : index
    %0 = vector.load %arg2[%c0, %c0_0] : memref<8x256xf32, #tpu.memory_space<vmem>>, vector<8x256xf32>
    %c0_1 = arith.constant 0 : index
    %c0_2 = arith.constant 0 : index
    %1 = vector.load %arg3[%c0_1, %c0_2] : memref<1x256xf32, #tpu.memory_space<vmem>>, vector<1x256xf32>
    %2 = vector.broadcast %1 : vector<1x256xf32> to vector<8x256xf32>
    %3 = arith.mulf %0, %2 : vector<8x256xf32>
    %c0_3 = arith.constant 0 : index
    %c0_4 = arith.constant 0 : index
    %4 = vector.load %arg4[%c0_3, %c0_4] : memref<8x256xf32, #tpu.memory_space<vmem>>, vector<8x256xf32>
    tpu.vector_store %arg4[%c0_3, %c0_4], %3 {strides = array<i32>} : memref<8x256xf32, #tpu.memory_space<vmem>>, vector<8x256xf32>,
    return
  }
  func.func @transform_0(%arg0: i32, %arg1: i32) -> (i32, i32) {
    %c0_i32 = arith.constant 0 : i32
    return %arg0, %arg1 : i32, i32
  }
  func.func @transform_1(%arg0: i32, %arg1: i32) -> (i32, i32) {
    %c0_i32 = arith.constant 0 : i32
    %c0_i32_0 = arith.constant 0 : i32
    return %c0_i32, %arg1 : i32, i32
  }
  func.func @transform_2(%arg0: i32, %arg1: i32) -> (i32, i32) {
    %c0_i32 = arith.constant 0 : i32
    return %arg0, %arg1 : i32, i32
  }
}

</mosaic_0001>

<llo_original>
// kernel: tpu_custom_call.1
$region0: #{tpu_custom_call.1}
  #allocation0 [shape = 'u32[]', space=smem, size = 0x4, offset = 0x4, fixed_abs, tag = 'smem constant byte address 0x4 - core index']
  #allocation1 [shape = 'u32[144,128]{1,0:T(1,128)}', space=vmem, size = 0x12000, scoped, tag = 'internal scratch']
  %s0 = inlined_call_operand.hbm [shape: f32[16,256], index: 0, kind: input, shape index: {}, may-alias: {0,2}]
  %s1 = inlined_call_operand.vmem [shape: f32[1,256], index: 1, kind: input, shape index: {}]
  %s2 = inlined_call_operand.hbm [shape: f32[16,256], index: 2, kind: output, shape index: {}, may-alias: {0,2}]
  %s3 = sld [smem:[#allocation0]]
  $region45: #{tpu_custom_call.1} parent=0
    _
  %s5 = ssub.s32 1, %s3
  %s6 = scalar_select 0, %s5, %s3
  $region1: #{tpu_custom_call.1} parent=0
    #allocation2 [shape = 'u8[16384]{0}', space=vmem, size = 0x4000, scoped, tag = 'input window, operand 0']
    #allocation3 [shape = 's32[2]{0}', space=sflag, size = 0x8, scoped, tag = 'scoped memory for tpu_custom_call.1']
    #allocation4 [shape = 's32[2]{0}', space=sflag, size = 0x8, scoped, tag = 'scoped memory for tpu_custom_call.1']
    #allocation5 [shape = 'u8[16384]{0}', space=vmem, size = 0x4000, scoped, tag = 'output window, operand 0']
    %7 = vsyncpa [#allocation3], 0
    %s8 = scalar_lea.sflag [#allocation3], 1
    %9 = vsyncpa %s8, 0
    %10 = vsyncpa [#allocation4], 0
    %s11 = scalar_lea.sflag [#allocation4], 1
    %12 = vsyncpa %s11, 0
    loop: start=0, step=1, limit=4
    $region2: #{tpu_custom_call.1} parent=1 // loop_pre_header
      _
    $region3: #{tpu_custom_call.1} parent=1 // loop_header
      %s14 = sphi 0, %s18
      %p15 = scmp.ge.s32.totalorder %s14, 4
      %s21 = sphi 0, %s33
      %s22 = sphi 0, %s29
      %s23 = sphi 0, %s21
      %s24 = sphi 0, %s22
      %s25 = sphi 0, %s23
      %s26 = sphi 0, %s24
      %s38 = sphi 0, %s40
      %s41 = sphi 0, %s38
      %s42 = sphi 0, %s41
      %s58 = sphi 0, %s42
      %s64 = sphi 0, %s66
      %s67 = sphi 0, %s64
      %s68 = sphi 0, %s67
      %s84 = sphi 0, %s68
      %s92 = sphi 0, %s94
      %s95 = sphi 0, %s92
      %s96 = sphi 0, %s95
      %s112 = sphi 0, %s96
    $region4: #{tpu_custom_call.1} parent=1 // loop_header_branch
      %17 = sbr.rel (%p15) target = $region8
    $region5: #{tpu_custom_call.1} parent=1 // loop_body
      %s19 = ssub.s32 %s14, 1
      %s20 = ssub.s32 %s14, 2
      %s27 = sadd.s32 1, %s22
      %p28 = scmp.ge.s32.totalorder %s27, 1
      %s29 = scalar_select %p28, 0, %s27
      %s30 = sadd.s32 1, %s21
      %s31 = scalar_select %p28, %s30, %s21
      %p32 = scmp.ge.s32.totalorder %s31, 2
      %s33 = scalar_select %p32, 0, %s31
      %s34 = ssub.s32 %s21, %s33
      %s35 = ssub.s32 %s22, %s29
      %s36 = sor.u32 %s34, %s35
      %p37 = scmp.eq.s32.totalorder %s36, 0
      %s39 = sadd.s32 %s38, 1
      %s40 = scalar_select %p37, %s38, %s39
      %p43 = pneg %p37
      %p44 = scmp.eq.s32.totalorder %s14, 1
      %p45 = por %p43, %p44
      %p46 = scmp.ne.s32.totalorder %s38, %s41
      %p47 = scmp.eq.s32.totalorder %s14, 0
      %p48 = por %p46, %p47
      %p49 = scmp.ne.s32.totalorder %s38, %s41
      %p50 = scmp.eq.s32.totalorder %s19, 1
      %p51 = por %p49, %p50
      %p52 = scmp.ne.s32.totalorder %s41, %s42
      %p53 = scmp.eq.s32.totalorder %s19, 0
      %p54 = por %p52, %p53
      %p55 = scmp.ne.s32.totalorder %s41, %s42
      %p56 = scmp.eq.s32.totalorder %s20, 1
      %p57 = por %p55, %p56
      %p59 = scmp.ne.s32.totalorder %s42, %s58
      %p60 = scmp.eq.s32.totalorder %s20, 0
      %p61 = por %p59, %p60
      %s62 = ssub.s32 %s22, %s29
      %p63 = scmp.eq.s32.totalorder %s62, 0
      %s65 = sadd.s32 %s64, 1
      %s66 = scalar_select %p63, %s64, %s65
      %p69 = pneg %p63
      %p70 = scmp.eq.s32.totalorder %s14, 1
      %p71 = por %p69, %p70
      %p72 = scmp.ne.s32.totalorder %s64, %s67
      %p73 = scmp.eq.s32.totalorder %s14, 0
      %p74 = por %p72, %p73
      %p75 = scmp.ne.s32.totalorder %s64, %s67
      %p76 = scmp.eq.s32.totalorder %s19, 1
      %p77 = por %p75, %p76
      %p78 = scmp.ne.s32.totalorder %s67, %s68
      %p79 = scmp.eq.s32.totalorder %s19, 0
      %p80 = por %p78, %p79
      %p81 = scmp.ne.s32.totalorder %s67, %s68
      %p82 = scmp.eq.s32.totalorder %s20, 1
      %p83 = por %p81, %p82
      %p85 = scmp.ne.s32.totalorder %s68, %s84
      %p86 = scmp.eq.s32.totalorder %s20, 0
      %p87 = por %p85, %p86
      %s88 = ssub.s32 %s21, %s33
      %s89 = ssub.s32 %s22, %s29
      %s90 = sor.u32 %s88, %s89
      %p91 = scmp.eq.s32.totalorder %s90, 0
      %s93 = sadd.s32 %s92, 1
      %s94 = scalar_select %p91, %s92, %s93
      %p97 = pneg %p91
      %p98 = scmp.eq.s32.totalorder %s14, 1
      %p99 = por %p97, %p98
      %p100 = scmp.ne.s32.totalorder %s92, %s95
      %p101 = scmp.eq.s32.totalorder %s14, 0
      %p102 = por %p100, %p101
      %p103 = scmp.ne.s32.totalorder %s92, %s95
      %p104 = scmp.eq.s32.totalorder %s19, 1
      %p105 = por %p103, %p104
      %p106 = scmp.ne.s32.totalorder %s95, %s96
      %p107 = scmp.eq.s32.totalorder %s19, 0
      %p108 = por %p106, %p107
      %p109 = scmp.ne.s32.totalorder %s95, %s96
      %p110 = scmp.eq.s32.totalorder %s20, 1
      %p111 = por %p109, %p110
      %p113 = scmp.ne.s32.totalorder %s96, %s112
      %p114 = scmp.eq.s32.totalorder %s20, 0
      %p115 = por %p113, %p114
      %p116 = scmp.le.s32.totalorder 1, %s14
      %p117 = scmp.lt.s32.totalorder %s14, 3
      %p118 = pnand %p116, %p117
      %p119 = pneg %p118
      // Predicated region
      $region9: #{tpu_custom_call.1} parent=5 // pred_check
        _
      $region10: #{tpu_custom_call.1} parent=5 // pred_check_branch
        %121 = sbr.rel (%p118) target = $region12
      $region11: #{tpu_custom_call.1} parent=5 // pred_region
        %s122 = ssub.s32 %s14, 1
        // Predicated region
        $region13: #{tpu_custom_call.1} parent=11 // pred_check
          %p123 = pneg %p80
        $region14: #{tpu_custom_call.1} parent=11 // pred_check_branch
          %125 = sbr.rel (%p123) target = $region16
        $region15: #{tpu_custom_call.1} parent=11 // pred_region
          %s126 = smul.u32 2, %s24
          %p127 = scmp.lt.s32.totalorder %s126, 1
          %s128 = scalar_select %p127, %s126, 1
          %s129 = scalar_lea.vmem %s1, %s128
          %s130 = smul.u32 2, %s24
        $region16: #{tpu_custom_call.1} parent=11 // pred_fallthru
          _
      $region12: #{tpu_custom_call.1} parent=5 // pred_fallthru
        _
      %p131 = scmp.lt.s32.totalorder %s14, 2
      // Predicated region
      $region17: #{tpu_custom_call.1} parent=5 // pred_check
        %p132 = pneg %p131
      $region18: #{tpu_custom_call.1} parent=5 // pred_check_branch
        %134 = sbr.rel (%p132) target = $region20
      $region19: #{tpu_custom_call.1} parent=5 // pred_region
        // Predicated region
        $region21: #{tpu_custom_call.1} parent=19 // pred_check
          %p135 = pneg %p48
        $region22: #{tpu_custom_call.1} parent=19 // pred_check_branch
          %137 = sbr.rel (%p135) target = $region24
        $region23: #{tpu_custom_call.1} parent=19 // pred_region
          %s138 = sand.u32 %s38, 1
          %s139 = scalar_lea.sflag [#allocation3], %s138
          %s140 = sand.u32 %s38, 1
          %s141 = smul.addr %s140, 16
          %s142 = scalar_lea.vmem [#allocation2], %s141
          %s143 = smul.u32 2, %s22
          %s145 = ssub.s32 256, 256
          %146 = vsyncadd %s139, %s145
          %s147 = smul.addr %s21, 2
          %s148 = sadd.s32 %s143, %s147
          %s149 = smul.addr %s148, 128
          %s150 = scalar_lea.hbm %s0, %s149
          %s152 = sshll.u32 %s142, 4
          %s153 = int_to_ptr.vmem [resolvable:$true] %s152
          %155 = dma.hbm_to_vmem [thread:$0]  %s150, 256, %s153, %s139
        $region24: #{tpu_custom_call.1} parent=19 // pred_fallthru
          _
      $region20: #{tpu_custom_call.1} parent=5 // pred_fallthru
        _
      %p156 = scmp.le.s32.totalorder 1, %s14
      %p157 = scmp.lt.s32.totalorder %s14, 3
      %p158 = pnand %p156, %p157
      %p159 = pneg %p158
      // Predicated region
      $region25: #{tpu_custom_call.1} parent=5 // pred_check
        _
      $region26: #{tpu_custom_call.1} parent=5 // pred_check_branch
        %161 = sbr.rel (%p158) target = $region28
      $region27: #{tpu_custom_call.1} parent=5 // pred_region
        %s162 = ssub.s32 %s14, 1
        %s163 = sand.u32 %s41, 1
        %s164 = scalar_lea.sflag [#allocation3], %s163
        %s165 = sand.u32 %s41, 1
        %s166 = smul.addr %s165, 16
        %s167 = scalar_lea.vmem [#allocation2], %s166
        // Predicated region
        $region29: #{tpu_custom_call.1} parent=27 // pred_check
          %p168 = pneg %p54
        $region30: #{tpu_custom_call.1} parent=27 // pred_check_branch
          %170 = sbr.rel (%p168) target = $region32
        $region31: #{tpu_custom_call.1} parent=27 // pred_region
          %171 = dma.done %s164, 256
        $region32: #{tpu_custom_call.1} parent=27 // pred_fallthru
          _
        %s172 = sand.u32 %s41, 1
        %s173 = scalar_lea.sflag [#allocation3], %s172
        %s174 = sand.u32 %s41, 1
        %s175 = smul.addr %s174, 16
        %s176 = scalar_lea.vmem [#allocation2], %s175
        %p177 = pneg %p54
        %p178 = pneg %p51
        %s179 = smul.u32 2, %s24
        %p180 = scmp.lt.s32.totalorder %s179, 1
        %s181 = scalar_select %p180, %s179, 1
        %s182 = scalar_lea.vmem %s1, %s181
        %p183 = pneg %p80
        %p184 = pneg %p77
        %p185 = pneg %p108
        %p186 = pneg %p105
        %s187 = sand.u32 %s95, 1
        %s188 = scalar_lea.sflag [#allocation4], %s187
        %s189 = sand.u32 %s95, 1
        %s190 = smul.addr %s189, 16
        %s191 = scalar_lea.vmem [#allocation5], %s190
        %s192 = smul.u32 2, %s24
        %s193 = smul.u32 2, %s24
        %p194 = scmp.lt.s32.totalorder %s193, 1
        %s195 = scalar_select %p194, %s193, 1
        %s196 = scalar_lea.vmem %s1, %s195
        %s197 = smul.u32 2, %s24
        %s198 = smul.u32 2, %s24
        %v199 = vld [vmem:[%s167] sm:$0xff]
        %v200 = vld [vmem:[%s167 + $0x8] sm:$0xff]
        %v201 = vld [vmem:[%s196] sm:$0x3]
        %v203 = vlaneseq
        %v204 = vshrl.u32 %v203, 7
        %v205 = vsub.s32 0, %v204
        %v206 = vrot.slane %v201, %v205
        %v207 = vlaneseq
        %v208 = vshrl.u32 %v207, 7
        %v209 = vsub.s32 1, %v208
        %v210 = vrot.slane %v201, %v209
        %v213 = vmul.f32 %v199, %v206
        %v214 = vmul.f32 %v200, %v210
        %215 = vst [vmem:[%s191] sm:$0xff] %v213
        %216 = vst [vmem:[%s191 + $0x8] sm:$0xff] %v214
        %s217 = sand.u32 %s95, 1
        %s218 = scalar_lea.sflag [#allocation4], %s217
        %s219 = sand.u32 %s95, 1
        %s220 = smul.addr %s219, 16
        %s221 = scalar_lea.vmem [#allocation5], %s220
        // Predicated region
        $region33: #{tpu_custom_call.1} parent=27 // pred_check
          %p222 = pneg %p105
        $region34: #{tpu_custom_call.1} parent=27 // pred_check_branch
          %224 = sbr.rel (%p222) target = $region36
        $region35: #{tpu_custom_call.1} parent=27 // pred_region
          %s225 = smul.u32 2, %s24
          %s227 = ssub.s32 256, 256
          %228 = vsyncadd %s218, %s227
          %s229 = smul.addr %s23, 2
          %s230 = sadd.s32 %s225, %s229
          %s231 = smul.addr %s230, 128
          %s232 = scalar_lea.hbm %s2, %s231
          %s234 = sshll.u32 %s221, 4
          %s235 = int_to_ptr.vmem [resolvable:$true] %s234
          %237 = dma.vmem_to_hbm [thread:$0]  %s235, 256, %s232, %s218
        $region36: #{tpu_custom_call.1} parent=27 // pred_fallthru
          _
      $region28: #{tpu_custom_call.1} parent=5 // pred_fallthru
        _
      %p238 = scmp.le.s32.totalorder 2, %s14
      // Predicated region
      $region37: #{tpu_custom_call.1} parent=5 // pred_check
        %p239 = pneg %p238
      $region38: #{tpu_custom_call.1} parent=5 // pred_check_branch
        %241 = sbr.rel (%p239) target = $region40
      $region39: #{tpu_custom_call.1} parent=5 // pred_region
        %s242 = ssub.s32 %s14, 2
        // Predicated region
        $region41: #{tpu_custom_call.1} parent=39 // pred_check
          %p243 = pneg %p111
        $region42: #{tpu_custom_call.1} parent=39 // pred_check_branch
          %245 = sbr.rel (%p243) target = $region44
        $region43: #{tpu_custom_call.1} parent=39 // pred_region
          %s246 = sand.u32 %s96, 1
          %s247 = scalar_lea.sflag [#allocation4], %s246
          %s248 = sand.u32 %s96, 1
          %s249 = smul.addr %s248, 16
          %s250 = scalar_lea.vmem [#allocation5], %s249
          %251 = dma.done %s247, 256
        $region44: #{tpu_custom_call.1} parent=39 // pred_fallthru
          _
      $region40: #{tpu_custom_call.1} parent=5 // pred_fallthru
        _
    $region6: #{tpu_custom_call.1} parent=1 // loop_footer
      %s18 = sadd.s32 1, %s14
    $region7: #{tpu_custom_call.1} parent=1 // loop_footer_branch
      %13 = sbr.rel target = $region3
    $region8: #{tpu_custom_call.1} parent=1 // loop_exit
      _
    %252 = vsyncpa [#allocation3], 1
    %s253 = scalar_lea.sflag [#allocation3], 1
    %254 = vsyncpa %s253, 1
    %255 = vsyncpa [#allocation4], 1
    %s256 = scalar_lea.sflag [#allocation4], 1
    %257 = vsyncpa %s256, 1

</llo_original>
